<compile_context>
chip_gen: v5e
topology: v5e:2x2
jax: 0.10.0
libtpu: 0.0.40
codegen_flags: <defaults>
</compile_context>

<pallas_src>
import functools

import jax
import jax.numpy as jnp
from jax.experimental import pallas as pl
from jax.experimental.pallas import tpu as pltpu


def _salient_kernel(x_ref, bn_ref, o_ref, *, inv_hw):
    """One grid step over a (Bt, C, HW_pad) batch slab.

    x_ref : (Bt, C, HW_pad) input slab, native dtype.
    bn_ref: (2,) SMEM scalars = folded BatchNorm2d(1) [scale, shift].
    o_ref : (Bt, C, HW_pad) output slab.
    """
    # 1) Squeeze: global average pool over the spatial (lane) axis.
    #    Sum over (possibly zero-padded) lanes, divide by the TRUE HW.
    pooled = jnp.sum(x_ref[...].astype(jnp.float32), axis=-1, keepdims=True) * inv_hw
    # pooled: (Bt, C, 1) f32, stays in sublane layout.

    # 2) Saliency map: channel mean of (pooled * x) -> (Bt, 1, HW_pad), f32.
    #    VPU broadcast-multiply + XLU sublane reduce; keepdims avoids relayout.
    wmap = jnp.mean(x_ref[...].astype(jnp.float32) * pooled, axis=1, keepdims=True)

    # 3) Folded (eval-mode) BatchNorm2d(1) from SMEM scalars + sigmoid gate (EUP).
    gate = jax.nn.sigmoid(wmap * bn_ref[0] + bn_ref[1])          # (Bt, 1, HW_pad)

    # 4) Spatial gating of every channel; lane-dense store in the output dtype.
    o_ref[...] = (x_ref[...] * gate).astype(o_ref.dtype)


def salient_block(x, gamma, beta, running_mean, running_var, eps=1e-5,
                  block_batch=None):
    """SalientBlock forward.  x: (N, C, H, W); BatchNorm2d(1) eval-mode params."""
    n, c, h, w = x.shape
    hw = h * w

    # ---- Lane-dense layout: pad spatial to a multiple of 128 ----------------
    hw_pad = max(128, ((hw + 127) // 128) * 128)
    x3 = x.reshape(n, c, hw)
    if hw_pad != hw:
        x3 = jnp.pad(x3, ((0, 0), (0, 0), (0, hw_pad - hw)))

    # ---- Fold eval-mode BatchNorm2d(1) into scale/shift SMEM scalars --------
    inv_std = 1.0 / jnp.sqrt(running_var.astype(jnp.float32) + eps)
    scale = (gamma.astype(jnp.float32) * inv_std).reshape(())
    shift = (beta.astype(jnp.float32)
             - running_mean.astype(jnp.float32) * gamma.astype(jnp.float32) * inv_std
             ).reshape(())
    bn = jnp.stack([scale, shift])                                # (2,) f32

    itemsize = jnp.dtype(x.dtype).itemsize
    bytes_per_image = c * hw_pad * itemsize

    # ---- Generation-aware VMEM budget ---------------------------------------
    try:
        vmem_cap = int(pltpu.get_tpu_info().vmem_capacity_bytes)
    except Exception:  # interpret mode / unknown chip: assume smallest (v7x, 64 MiB)
        vmem_cap = 64 * 1024 * 1024

    # Per-step VMEM model: 2x IN + 2x OUT double buffers (native dtype) plus
    # ~3 f32-sized in-kernel temporaries (x*pooled product, f32 view of x,
    # pre-cast output).  f32 -> divisor 7, bf16 -> divisor 10.
    divisor = 4 + 3 * max(1, 4 // itemsize)
    vmem_budget = int(0.8 * vmem_cap)
    if divisor * bytes_per_image > vmem_budget:
        # TODO(synk): add an HW-tiled two-pass fallback for very large feature maps.
        raise ValueError(
            f"SalientBlock: a single image needs ~{divisor * bytes_per_image} B of "
            f"VMEM, exceeding the budget of {vmem_budget} B on this chip; "
            f"HW-tiled fallback not implemented.")

    max_bt_vmem = max(1, vmem_budget // (divisor * bytes_per_image))

    # ---- Batch-tile selection ------------------------------------------------
    tile_floor = 2 * 1024 * 1024   # keep per-step slabs multi-MiB where possible
    if block_batch is not None:
        bt = max(1, min(block_batch, n, max_bt_vmem))
    else:
        bt = max(1, min(max_bt_vmem, n))
        grid_n0 = pl.cdiv(n, bt)
        if n >= 2:
            # Prefer an even, balanced grid (v7x has 2 TensorCores sharing HBM)
            # as long as per-step tiles stay above the efficiency floor.
            target_grid = max(2, grid_n0 + (grid_n0 % 2))
            bt_bal = pl.cdiv(n, target_grid)
            if bt_bal >= 1 and bt_bal * bytes_per_image >= tile_floor:
                bt = bt_bal
    grid_n = pl.cdiv(n, bt)

    tile_bytes = bt * bytes_per_image
    vmem_limit = int(min(int(0.9 * vmem_cap),
                         max(16 * 1024 * 1024, divisor * tile_bytes + (2 << 20))))

    kernel = functools.partial(_salient_kernel, inv_hw=1.0 / float(hw))

    out = pl.pallas_call(
        kernel,
        out_shape=jax.ShapeDtypeStruct((n, c, hw_pad), x.dtype),
        grid=(grid_n,),
        in_specs=[
            pl.BlockSpec((bt, c, hw_pad), lambda i: (i, 0, 0)),        # batch slab
            pl.BlockSpec(memory_space=pltpu.MemorySpace.SMEM),          # BN scalars
        ],
        out_specs=pl.BlockSpec((bt, c, hw_pad), lambda i: (i, 0, 0)),
        compiler_params=pltpu.CompilerParams(
            dimension_semantics=("parallel",),
            vmem_limit_bytes=vmem_limit,
        ),
        cost_estimate=pl.CostEstimate(
            flops=int(4 * n * c * hw),
            transcendentals=int(n * hw),
            bytes_accessed=int(2 * n * c * hw_pad * itemsize + 8),
        ),
    )(x3, bn)

    if hw_pad != hw:
        out = out[:, :, :hw]
    return out.reshape(n, c, h, w)


def _reference(x, gamma, beta, running_mean, running_var, eps=1e-5):
    pooled = jnp.mean(x, axis=(2, 3), keepdims=True)            # (N, C, 1, 1)
    wmap = jnp.mean(pooled * x, axis=1, keepdims=True)          # (N, 1, H, W)
    w_bn = (wmap - running_mean) / jnp.sqrt(running_var + eps) * gamma + beta
    return jax.nn.sigmoid(w_bn) * x


if __name__ == "__main__":
    key = jax.random.PRNGKey(0)
    kx1, kx2, kg, kb, km, kv = jax.random.split(key, 6)

    # BatchNorm2d(1) eval-mode parameters/buffers (num_features == 1).
    gamma = jax.random.uniform(kg, (1,), minval=0.5, maxval=1.5, dtype=jnp.float32)
    beta = jax.random.uniform(kb, (1,), minval=-0.5, maxval=0.5, dtype=jnp.float32)
    running_mean = jax.random.uniform(km, (1,), minval=-0.1, maxval=0.1, dtype=jnp.float32)
    running_var = jax.random.uniform(kv, (1,), minval=0.5, maxval=1.5, dtype=jnp.float32)

    # Case 1: lane-aligned spatial size (16x16 = 256 = 2*128).
    x1 = jax.random.normal(kx1, (2, 32, 16, 16), dtype=jnp.float32)
    out1 = jax.block_until_ready(salient_block(x1, gamma, beta, running_mean, running_var))
    ref1 = _reference(x1, gamma, beta, running_mean, running_var)
    assert out1.shape == x1.shape
    assert jnp.allclose(out1, ref1, atol=1e-5, rtol=1e-5), float(jnp.max(jnp.abs(out1 - ref1)))

    # Case 2: non-multiple-of-128 spatial size (14x14 = 196 -> padded to 256).
    x2 = jax.random.normal(kx2, (2, 8, 14, 14), dtype=jnp.float32)
    out2 = jax.block_until_ready(salient_block(x2, gamma, beta, running_mean, running_var))
    ref2 = _reference(x2, gamma, beta, running_mean, running_var)
    assert out2.shape == x2.shape
    assert jnp.allclose(out2, ref2, atol=1e-5, rtol=1e-5), float(jnp.max(jnp.abs(out2 - ref2)))

    print("KERNEL_OK")
</pallas_src>

<mosaic_0001>
module attributes {stable_mosaic.version = 11 : i64} {
  func.func @_salient_kernel(%arg0: i32, %arg1: memref<2x32x256xf32, #tpu.memory_space<vmem>>, %arg2: memref<2xf32, #tpu.memory_space<smem>>, %arg3: memref<2x32x256xf32, #tpu.memory_space<vmem>>) attributes {dimension_semantics = [#tpu.dimension_semantics<parallel>], iteration_bounds = array<i64: 1>, scalar_prefetch = 0 : i64, scratch_operands = 0 : i64, tpu.core_type = #tpu.core_type<tc>, window_params = [{transform_indices = @transform_0, window_bounds = array<i64: 2, 32, 256>}, {transform_indices = @transform_1, window_bounds = array<i64: 2>}, {transform_indices = @transform_2, window_bounds = array<i64: 2, 32, 256>}]} {
    %c0 = arith.constant 0 : index
    %c0_0 = arith.constant 0 : index
    %c0_1 = arith.constant 0 : index
    %0 = vector.load %arg1[%c0, %c0_0, %c0_1] : memref<2x32x256xf32, #tpu.memory_space<vmem>>, vector<2x32x256xf32>
    %cst = arith.constant dense<0.000000e+00> : vector<2x32xf32>
    %1 = vector.multi_reduction <add>, %0, %cst [2] : vector<2x32x256xf32> to vector<2x32xf32>
    %2 = vector.shape_cast %1 : vector<2x32xf32> to vector<2x32x1xf32>
    %cst_2 = arith.constant 3.906250e-03 : f32
    %3 = vector.broadcast %cst_2 : f32 to vector<2x32x1xf32>
    %4 = arith.mulf %2, %3 : vector<2x32x1xf32>
    %c0_3 = arith.constant 0 : index
    %c0_4 = arith.constant 0 : index
    %c0_5 = arith.constant 0 : index
    %5 = vector.load %arg1[%c0_3, %c0_4, %c0_5] : memref<2x32x256xf32, #tpu.memory_space<vmem>>, vector<2x32x256xf32>
    %6 = vector.broadcast %4 : vector<2x32x1xf32> to vector<2x32x256xf32>
    %7 = arith.mulf %5, %6 : vector<2x32x256xf32>
    %cst_6 = arith.constant dense<0.000000e+00> : vector<2x256xf32>
    %8 = vector.multi_reduction <add>, %7, %cst_6 [1] : vector<2x32x256xf32> to vector<2x256xf32>
    %9 = vector.shape_cast %8 : vector<2x256xf32> to vector<2x1x256xf32>
    %cst_7 = arith.constant 3.200000e+01 : f32
    %10 = vector.broadcast %cst_7 : f32 to vector<2x1x256xf32>
    %11 = arith.divf %9, %10 : vector<2x1x256xf32>
    %c0_8 = arith.constant 0 : index
    %12 = memref.load %arg2[%c0_8] : memref<2xf32, #tpu.memory_space<smem>>
    %13 = vector.broadcast %12 : f32 to vector<2x1x256xf32>
    %14 = arith.mulf %11, %13 : vector<2x1x256xf32>
    %c1 = arith.constant 1 : index
    %15 = memref.load %arg2[%c1] : memref<2xf32, #tpu.memory_space<smem>>
    %16 = vector.broadcast %15 : f32 to vector<2x1x256xf32>
    %17 = arith.addf %14, %16 : vector<2x1x256xf32>
    %18 = arith.negf %17 : vector<2x1x256xf32>
    %19 = math.exp %18 : vector<2x1x256xf32>
    %cst_9 = arith.constant 1.000000e+00 : f32
    %20 = vector.broadcast %cst_9 : f32 to vector<2x1x256xf32>
    %21 = arith.addf %20, %19 : vector<2x1x256xf32>
    %22 = arith.divf %20, %21 : vector<2x1x256xf32>
    %c0_10 = arith.constant 0 : index
    %c0_11 = arith.constant 0 : index
    %c0_12 = arith.constant 0 : index
    %23 = vector.load %arg1[%c0_10, %c0_11, %c0_12] : memref<2x32x256xf32, #tpu.memory_space<vmem>>, vector<2x32x256xf32>
    %24 = vector.broadcast %22 : vector<2x1x256xf32> to vector<2x32x256xf32>
    %25 = arith.mulf %23, %24 : vector<2x32x256xf32>
    %c0_13 = arith.constant 0 : index
    %c0_14 = arith.constant 0 : index
    %c0_15 = arith.constant 0 : index
    %26 = vector.load %arg3[%c0_13, %c0_14, %c0_15] : memref<2x32x256xf32, #tpu.memory_space<vmem>>, vector<2x32x256xf32>
    tpu.vector_store %arg3[%c0_13, %c0_14, %c0_15], %25 {strides = array<i32>} : memref<2x32x256xf32, #tpu.memory_space<vmem>>, vector<2x32x256xf32>,
    return
  }
  func.func @transform_0(%arg0: i32) -> (i32, i32, i32) {
    %c0_i32 = arith.constant 0 : i32
    %c0_i32_0 = arith.constant 0 : i32
    %c0_i32_1 = arith.constant 0 : i32
    return %arg0, %c0_i32, %c0_i32_0 : i32, i32, i32
  }
  func.func @transform_1(%arg0: i32) -> i32 {
    %c0_i32 = arith.constant 0 : i32
    %c0_i32_0 = arith.constant 0 : i32
    return %c0_i32 : i32
  }
  func.func @transform_2(%arg0: i32) -> (i32, i32, i32) {
    %c0_i32 = arith.constant 0 : i32
    %c0_i32_0 = arith.constant 0 : i32
    %c0_i32_1 = arith.constant 0 : i32
    return %arg0, %c0_i32, %c0_i32_0 : i32, i32, i32
  }
}

</mosaic_0001>

<llo_original>
// kernel: tpu_custom_call.1
$region0: #{tpu_custom_call.1}
  #allocation0 [shape = 'u32[]', space=smem, size = 0x4, offset = 0x4, fixed_abs, tag = 'smem constant byte address 0x4 - core index']
  #allocation1 [shape = 'u32[72,128]{1,0:T(1,128)}', space=vmem, size = 0x9000, scoped, tag = 'internal scratch']
  %s0 = inlined_call_operand.hbm [shape: f32[2,32,256], index: 0, kind: input, shape index: {}]
  %s1 = inlined_call_operand.hbm [shape: f32[2], index: 1, kind: input, shape index: {}]
  %s2 = inlined_call_operand.hbm [shape: f32[2,32,256], index: 2, kind: output, shape index: {}]
  %s3 = sld [smem:[#allocation0]]
  $region26: #{tpu_custom_call.1} parent=0
    _
  %s5 = ssub.s32 1, %s3
  %s6 = scalar_select 0, %s5, %s3
  $region1: #{tpu_custom_call.1} parent=0
    #allocation2 [shape = 'u8[65536]{0}', space=vmem, size = 0x10000, scoped, tag = 'input window, operand 0, single buffered']
    #allocation3 [shape = 's32[1]{0}', space=sflag, size = 0x4, scoped, tag = 'scoped memory for tpu_custom_call.1']
    #allocation4 [shape = 's32[1]{0}', space=sflag, size = 0x4, scoped, tag = 'scoped memory for tpu_custom_call.1']
    #allocation5 [shape = 's32[1]{0}', space=sflag, size = 0x4, scoped, tag = 'scoped memory for tpu_custom_call.1']
    #allocation6 [shape = 'u8[512]{0}', space=smem, size = 0x200, scoped, tag = 'input window, operand 1, single buffered']
    #allocation7 [shape = 'u8[65536]{0}', space=vmem, size = 0x10000, scoped, tag = 'output window, operand 0, single buffered']
    %7 = vsyncpa [#allocation3], 0
    %8 = vsyncpa [#allocation5], 0
    %9 = vsyncpa [#allocation4], 0
    // Predicated region
    $region2: #{tpu_custom_call.1} parent=1 // pred_check
      _
    $region3: #{tpu_custom_call.1} parent=1 // pred_check_branch
      %11 = sbr.rel (0) target = $region5
    $region4: #{tpu_custom_call.1} parent=1 // pred_region
      %13 = vsyncadd [#allocation3], 0
      %s14 = sshll.u32 %s0, 4
      %s15 = int_to_ptr.hbm [resolvable:$true] %s14
      %s16 = sshll.u32 [#allocation2], 4
      %s17 = int_to_ptr.vmem [resolvable:$true] %s16
      %22 = dma.hbm_to_vmem [thread:$0]  %s15, 2048, %s17, [#allocation3], 256, 256, 16
    $region5: #{tpu_custom_call.1} parent=1 // pred_fallthru
      _
    // Predicated region
    $region6: #{tpu_custom_call.1} parent=1 // pred_check
      _
    $region7: #{tpu_custom_call.1} parent=1 // pred_check_branch
      %24 = sbr.rel (0) target = $region9
    $region8: #{tpu_custom_call.1} parent=1 // pred_region
      %26 = vsyncadd [#allocation5], 0
      %s28 = sshll.u32 %s1, 4
      %s29 = int_to_ptr.hbm [resolvable:$true] %s28
      %31 = dma.hbm_to_smem %s29, 16, [#allocation6], [#allocation5]
    $region9: #{tpu_custom_call.1} parent=1 // pred_fallthru
      _
    // Predicated region
    $region10: #{tpu_custom_call.1} parent=1 // pred_check
      _
    $region11: #{tpu_custom_call.1} parent=1 // pred_check_branch
      %33 = sbr.rel (0) target = $region13
    $region12: #{tpu_custom_call.1} parent=1 // pred_region
      %35 = dma.done [#allocation3], 2048
    $region13: #{tpu_custom_call.1} parent=1 // pred_fallthru
      _
    // Predicated region
    $region14: #{tpu_custom_call.1} parent=1 // pred_check
      _
    $region15: #{tpu_custom_call.1} parent=1 // pred_check_branch
      %37 = sbr.rel (0) target = $region17
    $region16: #{tpu_custom_call.1} parent=1 // pred_region
      %39 = dma.done [#allocation5], 16
    $region17: #{tpu_custom_call.1} parent=1 // pred_fallthru
      _
    %40 = sfence
    %v41 = vld [vmem:[#allocation2] sm:$0xff]
    %v42 = vld [vmem:[#allocation2 + $0x8] sm:$0xff]
    %v43 = vld [vmem:[#allocation2 + $0x10] sm:$0xff]
    %v44 = vld [vmem:[#allocation2 + $0x18] sm:$0xff]
    %v45 = vld [vmem:[#allocation2 + $0x20] sm:$0xff]
    %v46 = vld [vmem:[#allocation2 + $0x28] sm:$0xff]
    %v47 = vld [vmem:[#allocation2 + $0x30] sm:$0xff]
    %v48 = vld [vmem:[#allocation2 + $0x38] sm:$0xff]
    %v49 = vld [vmem:[#allocation2 + $0x40] sm:$0xff]
    %v50 = vld [vmem:[#allocation2 + $0x48] sm:$0xff]
    %v51 = vld [vmem:[#allocation2 + $0x50] sm:$0xff]
    %v52 = vld [vmem:[#allocation2 + $0x58] sm:$0xff]
    %v53 = vld [vmem:[#allocation2 + $0x60] sm:$0xff]
    %v54 = vld [vmem:[#allocation2 + $0x68] sm:$0xff]
    %v55 = vld [vmem:[#allocation2 + $0x70] sm:$0xff]
    %v56 = vld [vmem:[#allocation2 + $0x78] sm:$0xff]
    %v57 = vadd.f32 %v41, %v42
    %58 = vadd.xlane.f32.xlu0 %v57
    %v59 = vpop.xlane.xlu0 %58
    %v60 = vadd.f32 %v43, %v44
    %61 = vadd.xlane.f32.xlu0 %v60
    %v62 = vpop.xlane.xlu0 %61
    %v63 = vadd.f32 %v45, %v46
    %64 = vadd.xlane.f32.xlu0 %v63
    %v65 = vpop.xlane.xlu0 %64
    %v66 = vadd.f32 %v47, %v48
    %67 = vadd.xlane.f32.xlu0 %v66
    %v68 = vpop.xlane.xlu0 %67
    %v69 = vadd.f32 %v49, %v50
    %70 = vadd.xlane.f32.xlu0 %v69
    %v71 = vpop.xlane.xlu0 %70
    %v72 = vadd.f32 %v51, %v52
    %73 = vadd.xlane.f32.xlu0 %v72
    %v74 = vpop.xlane.xlu0 %73
    %v75 = vadd.f32 %v53, %v54
    %76 = vadd.xlane.f32.xlu0 %v75
    %v77 = vpop.xlane.xlu0 %76
    %v78 = vadd.f32 %v55, %v56
    %79 = vadd.xlane.f32.xlu0 %v78
    %v80 = vpop.xlane.xlu0 %79
    %v81 = vmul.f32 %v59, 0.00390625
    %v82 = vmul.f32 %v62, 0.00390625
    %v83 = vmul.f32 %v65, 0.00390625
    %v84 = vmul.f32 %v68, 0.00390625
    %v85 = vmul.f32 %v71, 0.00390625
    %v86 = vmul.f32 %v74, 0.00390625
    %v87 = vmul.f32 %v77, 0.00390625
    %v88 = vmul.f32 %v80, 0.00390625
    %v89 = vmul.f32 %v41, %v81
    %v90 = vmul.f32 %v42, %v81
    %v91 = vmul.f32 %v43, %v82
    %v92 = vmul.f32 %v44, %v82
    %v93 = vmul.f32 %v45, %v83
    %v94 = vmul.f32 %v46, %v83
    %v95 = vmul.f32 %v47, %v84
    %v96 = vmul.f32 %v48, %v84
    %v97 = vmul.f32 %v49, %v85
    %v98 = vmul.f32 %v50, %v85
    %v99 = vmul.f32 %v51, %v86
    %v100 = vmul.f32 %v52, %v86
    %v101 = vmul.f32 %v53, %v87
    %v102 = vmul.f32 %v54, %v87
    %v103 = vmul.f32 %v55, %v88
    %v104 = vmul.f32 %v56, %v88
    %v105 = vadd.f32 %v89, %v91
    %v106 = vadd.f32 %v105, %v93
    %v107 = vadd.f32 %v106, %v95
    %v108 = vrot.slane %v107, 4
    %v109 = vadd.f32 %v107, %v108
    %v110 = vrot.slane %v109, 2
    %v111 = vadd.f32 %v109, %v110
    %v112 = vrot.slane %v111, 1
    %v113 = vadd.f32 %v111, %v112
    %v114 = vadd.f32 %v90, %v92
    %v115 = vadd.f32 %v114, %v94
    %v116 = vadd.f32 %v115, %v96
    %v117 = vrot.slane %v116, 4
    %v118 = vadd.f32 %v116, %v117
    %v119 = vrot.slane %v118, 2
    %v120 = vadd.f32 %v118, %v119
    %v121 = vrot.slane %v120, 1
    %v122 = vadd.f32 %v120, %v121
    %v123 = vadd.f32 %v97, %v99
    %v124 = vadd.f32 %v123, %v101
    %v125 = vadd.f32 %v124, %v103
    %v126 = vrot.slane %v125, 4
    %v127 = vadd.f32 %v125, %v126
    %v128 = vrot.slane %v127, 2
    %v129 = vadd.f32 %v127, %v128
    %v130 = vrot.slane %v129, 1
    %v131 = vadd.f32 %v129, %v130
    %v132 = vadd.f32 %v98, %v100
    %v133 = vadd.f32 %v132, %v102
    %v134 = vadd.f32 %v133, %v104
    %v135 = vrot.slane %v134, 4
    %v136 = vadd.f32 %v134, %v135
    %v137 = vrot.slane %v136, 2
    %v138 = vadd.f32 %v136, %v137
    %v139 = vrot.slane %v138, 1
    %v140 = vadd.f32 %v138, %v139
    %v141 = vrcp.pop 32.0
    %v142 = vmul.f32 32.0, %v141
    %v143 = vsub.f32 1.0, %v142
    %v144 = vmul.f32 %v141, %v143
    %v145 = vadd.f32 %v141, %v144
    %vm146 = vweird.f32 %v141
    %v147 = vsel %vm146, %v141, %v145
    %v148 = vmul.f32 %v113, %v147
    %v149 = vmul.f32 %v122, %v147
    %v150 = vmul.f32 %v131, %v147
    %v151 = vmul.f32 %v140, %v147
    %s152 = sld [smem:[#allocation6]]
    %v153 = vstv %s152
    %v154 = vmul.f32 %v148, %v153
    %v155 = vmul.f32 %v149, %v153
    %v156 = vmul.f32 %v150, %v153
    %v157 = vmul.f32 %v151, %v153
    %s158 = sld [smem:[#allocation6 + $0x1]]
    %v159 = vstv %s158
    %v160 = vadd.f32 %v154, %v159
    %v161 = vadd.f32 %v155, %v159
    %v162 = vadd.f32 %v156, %v159
    %v163 = vadd.f32 %v157, %v159
    %v164 = vxor.u32 %v160, 2147483648
    %v165 = vxor.u32 %v161, 2147483648
    %v166 = vxor.u32 %v162, 2147483648
    %v167 = vxor.u32 %v163, 2147483648
    %v168 = vmul.f32 %v164, 1.442695
    %v169 = vpow.pop %v168
    %v170 = vmul.f32 %v165, 1.442695
    %v171 = vpow.pop %v170
    %v172 = vmul.f32 %v166, 1.442695
    %v173 = vpow.pop %v172
    %v174 = vmul.f32 %v167, 1.442695
    %v175 = vpow.pop %v174
    %v176 = vadd.f32 %v169, 1.0
    %v177 = vadd.f32 %v171, 1.0
    %v178 = vadd.f32 %v173, 1.0
    %v179 = vadd.f32 %v175, 1.0
    %v180 = vrcp.pop %v176
    %v181 = vmul.f32 %v176, %v180
    %v182 = vsub.f32 1.0, %v181
    %v183 = vmul.f32 %v180, %v182
    %v184 = vadd.f32 %v180, %v183
    %vm185 = vweird.f32 %v176
    %vm186 = vweird.f32 %v180
    %vm187 = vmor %vm185, %vm186
    %v188 = vsel %vm187, %v180, %v184
    %v189 = vand.u32 2147483647, %v176
    %vm190 = vcmp.eq.f32.partialorder %v189, 8.507059e+37
    %v191 = vand.u32 %v176, 2147483648
    %v192 = vor.u32 1.1754944e-38, %v191
    %v193 = vsel %vm190, %v192, %v188
    %v194 = vmul.f32 1.0, %v193
    %v195 = vrcp.pop %v177
    %v196 = vmul.f32 %v177, %v195
    %v197 = vsub.f32 1.0, %v196
    %v198 = vmul.f32 %v195, %v197
    %v199 = vadd.f32 %v195, %v198
    %vm200 = vweird.f32 %v177
    %vm201 = vweird.f32 %v195
    %vm202 = vmor %vm200, %vm201
    %v203 = vsel %vm202, %v195, %v199
    %v204 = vand.u32 2147483647, %v177
    %vm205 = vcmp.eq.f32.partialorder %v204, 8.507059e+37
    %v206 = vand.u32 %v177, 2147483648
    %v207 = vor.u32 1.1754944e-38, %v206
    %v208 = vsel %vm205, %v207, %v203
    %v209 = vmul.f32 1.0, %v208
    %v210 = vrcp.pop %v178
    %v211 = vmul.f32 %v178, %v210
    %v212 = vsub.f32 1.0, %v211
    %v213 = vmul.f32 %v210, %v212
    %v214 = vadd.f32 %v210, %v213
    %vm215 = vweird.f32 %v178
    %vm216 = vweird.f32 %v210
    %vm217 = vmor %vm215, %vm216
    %v218 = vsel %vm217, %v210, %v214
    %v219 = vand.u32 2147483647, %v178
    %vm220 = vcmp.eq.f32.partialorder %v219, 8.507059e+37
    %v221 = vand.u32 %v178, 2147483648
    %v222 = vor.u32 1.1754944e-38, %v221
    %v223 = vsel %vm220, %v222, %v218
    %v224 = vmul.f32 1.0, %v223
    %v225 = vrcp.pop %v179
    %v226 = vmul.f32 %v179, %v225
    %v227 = vsub.f32 1.0, %v226
    %v228 = vmul.f32 %v225, %v227
    %v229 = vadd.f32 %v225, %v228
    %vm230 = vweird.f32 %v179
    %vm231 = vweird.f32 %v225
    %vm232 = vmor %vm230, %vm231
    %v233 = vsel %vm232, %v225, %v229
    %v234 = vand.u32 2147483647, %v179
    %vm235 = vcmp.eq.f32.partialorder %v234, 8.507059e+37
    %v236 = vand.u32 %v179, 2147483648
    %v237 = vor.u32 1.1754944e-38, %v236
    %v238 = vsel %vm235, %v237, %v233
    %v239 = vmul.f32 1.0, %v238
    %v240 = vmul.f32 %v41, %v194
    %v241 = vmul.f32 %v42, %v209
    %v242 = vmul.f32 %v43, %v194
    %v243 = vmul.f32 %v44, %v209
    %v244 = vmul.f32 %v45, %v194
    %v245 = vmul.f32 %v46, %v209
    %v246 = vmul.f32 %v47, %v194
    %v247 = vmul.f32 %v48, %v209
    %v248 = vmul.f32 %v49, %v224
    %v249 = vmul.f32 %v50, %v239
    %v250 = vmul.f32 %v51, %v224
    %v251 = vmul.f32 %v52, %v239
    %v252 = vmul.f32 %v53, %v224
    %v253 = vmul.f32 %v54, %v239
    %v254 = vmul.f32 %v55, %v224
    %v255 = vmul.f32 %v56, %v239
    %256 = vst [vmem:[#allocation7] sm:$0xff] %v240
    %257 = vst [vmem:[#allocation7 + $0x8] sm:$0xff] %v241
    %258 = vst [vmem:[#allocation7 + $0x10] sm:$0xff] %v242
    %259 = vst [vmem:[#allocation7 + $0x18] sm:$0xff] %v243
    %260 = vst [vmem:[#allocation7 + $0x20] sm:$0xff] %v244
    %261 = vst [vmem:[#allocation7 + $0x28] sm:$0xff] %v245
    %262 = vst [vmem:[#allocation7 + $0x30] sm:$0xff] %v246
    %263 = vst [vmem:[#allocation7 + $0x38] sm:$0xff] %v247
    %264 = vst [vmem:[#allocation7 + $0x40] sm:$0xff] %v248
    %265 = vst [vmem:[#allocation7 + $0x48] sm:$0xff] %v249
    %266 = vst [vmem:[#allocation7 + $0x50] sm:$0xff] %v250
    %267 = vst [vmem:[#allocation7 + $0x58] sm:$0xff] %v251
    %268 = vst [vmem:[#allocation7 + $0x60] sm:$0xff] %v252
    %269 = vst [vmem:[#allocation7 + $0x68] sm:$0xff] %v253
    %270 = vst [vmem:[#allocation7 + $0x70] sm:$0xff] %v254
    %271 = vst [vmem:[#allocation7 + $0x78] sm:$0xff] %v255
    // Predicated region
    $region18: #{tpu_custom_call.1} parent=1 // pred_check
      _
    $region19: #{tpu_custom_call.1} parent=1 // pred_check_branch
      %273 = sbr.rel (0) target = $region21
    $region20: #{tpu_custom_call.1} parent=1 // pred_region
      %275 = vsyncadd [#allocation4], 0
      %s276 = sshll.u32 [#allocation7], 4
      %s277 = int_to_ptr.vmem [resolvable:$true] %s276
      %s278 = sshll.u32 %s2, 4
      %s279 = int_to_ptr.hbm [resolvable:$true] %s278
      %284 = dma.vmem_to_hbm [thread:$0]  %s277, 2048, %s279, [#allocation4], 256, 256, 16
    $region21: #{tpu_custom_call.1} parent=1 // pred_fallthru
      _
    // Predicated region
    $region22: #{tpu_custom_call.1} parent=1 // pred_check
      _
    $region23: #{tpu_custom_call.1} parent=1 // pred_check_branch
      %286 = sbr.rel (0) target = $region25
    $region24: #{tpu_custom_call.1} parent=1 // pred_region
      %288 = dma.done [#allocation4], 2048
    $region25: #{tpu_custom_call.1} parent=1 // pred_fallthru
      _
    %289 = vsyncpa [#allocation3], 1
    %290 = vsyncpa [#allocation4], 1
    %291 = vsyncpa [#allocation5], 1

</llo_original>
